<compile_context>
chip_gen: v7x
topology: tpu7x:2x2x1
jax: 0.10.0
libtpu: 0.0.40
codegen_flags: <defaults>
</compile_context>

<pallas_src>
import jax
import jax.numpy as jnp
from jax.experimental import pallas as pl
from jax.experimental.pallas import tpu as pltpu

_LANE = 128  # vreg lane count; last block dim must be a multiple of this


def _round_up(x: int, m: int) -> int:
    return ((x + m - 1) // m) * m


def _make_keep_kernel(cut: float, d: int):
    """keep[e] = (sum_k score[e, k]^2 >= cut), written lane-dense as [1, TE]."""

    def keep_kernel(score_ref, keep_ref):
        s = score_ref[...].astype(jnp.float32)               # [TE, D]  (VPU)
        s2 = s * s                                           # [TE, D]  (VPU)
        ones_row = jnp.ones((1, d), jnp.float32)
        # Contract D on the MXU: (1, D) . (TE, D)^T -> (1, TE), lane-dense.
        sumsq = jax.lax.dot_general(
            ones_row, s2,
            dimension_numbers=(((1,), (1,)), ((), ())),
            preferred_element_type=jnp.float32,
        )                                                    # [1, TE]
        keep_ref[...] = (sumsq >= cut).astype(jnp.int32)     # lane-dense store

    return keep_kernel


def dynamic_connection_keep_mask(score, *, threshold=1.0, t=1.0, tile_e=1024):
    """Per-edge keep mask: keep[e]  <=>  ||score[e]|| / t >= threshold.

    score: [E, D] float (f32 or bf16).  Assumes t > 0.
    Returns keep: [E] bool.
    """
    E, D = score.shape

    # ---- tile selection: lane-aligned, VMEM-trivial, >= 2 grid steps if possible.
    e_aligned = _round_up(E, _LANE)
    tile_e = max(_LANE, min(_round_up(int(tile_e), _LANE), e_aligned))
    if e_aligned >= 2 * _LANE and tile_e >= e_aligned:
        tile_e = _round_up(e_aligned // 2, _LANE)   # keep 2 steps for v7x megacore
    e_pad = _round_up(E, tile_e)
    grid = e_pad // tile_e

    # zero-pad the ragged tail (padded rows are sliced off below)
    score_p = score if e_pad == E else jnp.pad(score, ((0, e_pad - E), (0, 0)))

    thr = float(threshold) * float(t)
    cut = thr * thr if thr > 0.0 else -1.0   # thr <= 0  =>  keep every edge

    keep_i32 = pl.pallas_call(
        _make_keep_kernel(cut, D),
        out_shape=jax.ShapeDtypeStruct((1, e_pad), jnp.int32),
        grid_spec=pltpu.PrefetchScalarGridSpec(
            num_scalar_prefetch=0,
            grid=(grid,),
            in_specs=[pl.BlockSpec((tile_e, D), lambda i: (i, 0))],
            out_specs=pl.BlockSpec((1, tile_e), lambda i: (0, i)),
        ),
        compiler_params=pltpu.CompilerParams(
            dimension_semantics=("parallel",),
        ),
    )(score_p)

    return keep_i32[0, :E] > 0


def dynamic_connection_forward(score, y, z=None, *, threshold=1.0, t=1.0,
                               tile_e=1024):
    """Mirrors DynamicConnection.forward.

    dgl's remove_edges yields a dynamically sized graph, which has no static
    JAX shape, so kept edges are compacted to the FRONT of fixed-size buffers
    of length E (zero-padded) and `num_kept` gives the valid prefix length.

    Returns (y_kept_padded, z_kept_padded_or_None, num_kept, keep_mask).
    """
    E = score.shape[0]
    keep = dynamic_connection_keep_mask(
        score, threshold=threshold, t=t, tile_e=tile_e)
    num_kept = jnp.sum(keep.astype(jnp.int32))

    # TODO(synk): end-to-end, this compaction (nonzero + gathers) dominates the
    # HBM traffic; a follow-up Pallas pass could scalar-prefetch the compaction
    # indices (PrefetchScalarGridSpec + pl.Element row gather) to fuse it.
    (idx,) = jnp.nonzero(keep, size=E, fill_value=E)   # E == invalid sentinel
    valid = (idx < E)[:, None]
    safe_idx = jnp.where(idx < E, idx, 0)

    def _gather_compact(feat):
        # clamp-and-mask gather: no padded full copy of `feat` is materialised.
        return jnp.where(valid, jnp.take(feat, safe_idx, axis=0),
                         0).astype(feat.dtype)

    y_kept = _gather_compact(y)
    z_kept = _gather_compact(z) if z is not None else None
    return y_kept, z_kept, num_kept, keep


def _make_scores(key, e, d, dtype=jnp.float32):
    """Random scores whose norms straddle the threshold 1.0 but stay >= 5%
    away from it, so summation-order float differences cannot flip the mask."""
    k_dir, k_mag = jax.random.split(key)
    raw = jax.random.normal(k_dir, (e, d), jnp.float32)
    unit = raw / jnp.linalg.norm(raw, axis=-1, keepdims=True)
    u = jax.random.uniform(k_mag, (e, 1), minval=-0.5, maxval=0.5)
    mag = 1.0 + jnp.where(u >= 0, u + 0.05, u - 0.05)   # [0.45,0.95] U [1.05,1.55]
    return (unit * mag).astype(dtype)


if __name__ == "__main__":
    key = jax.random.PRNGKey(0)
    k_score, k_y, k_z = jax.random.split(key, 3)

    E, D_score, D_y, D_z = 128, 32, 16, 16
    score = _make_scores(k_score, E, D_score)
    y = jax.random.normal(k_y, (E, D_y), dtype=jnp.float32)
    z = jax.random.normal(k_z, (E, D_z), dtype=jnp.float32)

    y_kept, z_kept, num_kept, keep = dynamic_connection_forward(
        score, y, z, threshold=1.0, t=1.0)
    jax.block_until_ready((y_kept, z_kept, num_kept, keep))

    # reference: drop iff norm / T < threshold  =>  keep iff norm / T >= th
    ref_keep = jnp.linalg.norm(score, axis=-1) / 1.0 >= 1.0
    assert bool(jnp.all(ref_keep == keep))
    nk = int(num_kept)
    assert nk == int(jnp.sum(ref_keep))
    ref_idx = jnp.nonzero(ref_keep)[0]
    assert bool(jnp.allclose(y_kept[:nk], y[ref_idx]))
    assert bool(jnp.allclose(z_kept[:nk], z[ref_idx]))
    assert bool(jnp.all(y_kept[nk:] == 0.0))

    # exercise the ragged-E padding + multi-tile (grid >= 2) path
    E2 = 200
    score2 = _make_scores(jax.random.PRNGKey(1), E2, D_score)
    keep2 = dynamic_connection_keep_mask(score2, threshold=1.0, t=1.0)
    jax.block_until_ready(keep2)
    assert keep2.shape == (E2,)
    ref_keep2 = jnp.linalg.norm(score2, axis=-1) >= 1.0
    assert bool(jnp.all(ref_keep2 == keep2))

    print("KERNEL_OK")
</pallas_src>

<mosaic_0001>
module attributes {stable_mosaic.version = 11 : i64} {
  func.func @keep_kernel(%arg0: i32, %arg1: memref<128x32xf32, #tpu.memory_space<vmem>>, %arg2: memref<1x128xi32, #tpu.memory_space<vmem>>) attributes {dimension_semantics = [#tpu.dimension_semantics<parallel>], iteration_bounds = array<i64: 1>, scalar_prefetch = 0 : i64, scratch_operands = 0 : i64, tpu.core_type = #tpu.core_type<tc>, window_params = [{transform_indices = @transform_0, window_bounds = array<i64: 128, 32>}, {transform_indices = @transform_1, window_bounds = array<i64: 1, 128>}]} {
    %c0 = arith.constant 0 : index
    %c0_0 = arith.constant 0 : index
    %0 = vector.load %arg1[%c0, %c0_0] : memref<128x32xf32, #tpu.memory_space<vmem>>, vector<128x32xf32>
    %1 = arith.mulf %0, %0 : vector<128x32xf32>
    %cst = arith.constant 1.000000e+00 : f32
    %2 = vector.broadcast %cst : f32 to vector<1x32xf32>
    %cst_1 = arith.constant dense<0.000000e+00> : vector<1x128xf32>
    %3 = tpu.matmul %2, %1, %cst_1 {dimension_numbers = #tpu.dot_dimension_numbers<[1], [1], [0], [0], [0, 0, 1, 0], [], []>} : vector<1x32xf32>, vector<128x32xf32>, vector<1x128xf32> -> vector<1x128xf32>
    %cst_2 = arith.constant 1.000000e+00 : f32
    %4 = vector.broadcast %cst_2 : f32 to vector<1x128xf32>
    %5 = arith.cmpf oge, %3, %4 : vector<1x128xf32>
    %6 = arith.extui %5 : vector<1x128xi1> to vector<1x128xi32>
    %c0_3 = arith.constant 0 : index
    %c0_4 = arith.constant 0 : index
    %7 = vector.load %arg2[%c0_3, %c0_4] : memref<1x128xi32, #tpu.memory_space<vmem>>, vector<1x128xi32>
    tpu.vector_store %arg2[%c0_3, %c0_4], %6 {strides = array<i32>} : memref<1x128xi32, #tpu.memory_space<vmem>>, vector<1x128xi32>,
    return
  }
  func.func @transform_0(%arg0: i32) -> (i32, i32) {
    %c0_i32 = arith.constant 0 : i32
    %c0_i32_0 = arith.constant 0 : i32
    return %arg0, %c0_i32 : i32, i32
  }
  func.func @transform_1(%arg0: i32) -> (i32, i32) {
    %c0_i32 = arith.constant 0 : i32
    %c0_i32_0 = arith.constant 0 : i32
    return %c0_i32, %arg0 : i32, i32
  }
}

</mosaic_0001>

<llo_original>
// kernel: tpu_custom_call.1
$region0: #{tpu_custom_call.1}
  #allocation0 [shape = 'u32[]', space=smem, size = 0x4, offset = 0x4, fixed_abs, tag = 'smem constant byte address 0x4 - core index']
  #allocation1 [shape = 'u32[144,128]{1,0:T(1,128)}', space=vmem, size = 0x12000, scoped, tag = 'internal scratch']
  %s0 = inlined_call_operand.vmem [shape: f32[128,32], index: 0, kind: input, shape index: {}]
  %s1 = inlined_call_operand.hbm [shape: s32[1,128], index: 1, kind: output, shape index: {}]
  %s2 = sld [smem:[#allocation0]]
  $region14: #{tpu_custom_call.1} parent=0
    _
  %s4 = ssub.s32 1, %s2
  %s5 = scalar_select 0, %s4, %s2
  $region1: #{tpu_custom_call.1} parent=0
    #allocation2 [shape = 'u8[512]{0}', space=vmem, size = 0x400, scoped, tag = 'output window, operand 0, single buffered']
    #allocation3 [shape = 's32[1]{0}', space=sflag, size = 0x4, scoped, tag = 'scoped memory for tpu_custom_call.1']
    %6 = vsyncpa [#allocation3], 0
    // Predicated region
    $region2: #{tpu_custom_call.1} parent=1 // pred_check
      _
    $region3: #{tpu_custom_call.1} parent=1 // pred_check_branch
      %8 = sbr.rel (0) target = $region5
    $region4: #{tpu_custom_call.1} parent=1 // pred_region
      _
    $region5: #{tpu_custom_call.1} parent=1 // pred_fallthru
      _
    %v9 = vld [vmem:[%s0] sm:$0xff]
    %v10 = vld [vmem:[%s0 + $0x8] sm:$0xff]
    %v11 = vld [vmem:[%s0 + $0x10] sm:$0xff]
    %v12 = vld [vmem:[%s0 + $0x18] sm:$0xff]
    %v13 = vld [vmem:[%s0 + $0x20] sm:$0xff]
    %v14 = vld [vmem:[%s0 + $0x28] sm:$0xff]
    %v15 = vld [vmem:[%s0 + $0x30] sm:$0xff]
    %v16 = vld [vmem:[%s0 + $0x38] sm:$0xff]
    %v17 = vld [vmem:[%s0 + $0x40] sm:$0xff]
    %v18 = vld [vmem:[%s0 + $0x48] sm:$0xff]
    %v19 = vld [vmem:[%s0 + $0x50] sm:$0xff]
    %v20 = vld [vmem:[%s0 + $0x58] sm:$0xff]
    %v21 = vld [vmem:[%s0 + $0x60] sm:$0xff]
    %v22 = vld [vmem:[%s0 + $0x68] sm:$0xff]
    %v23 = vld [vmem:[%s0 + $0x70] sm:$0xff]
    %v24 = vld [vmem:[%s0 + $0x78] sm:$0xff]
    %v25 = vmul.f32 %v9, %v9
    %v26 = vmul.f32 %v10, %v10
    %v27 = vmul.f32 %v11, %v11
    %v28 = vmul.f32 %v12, %v12
    %v29 = vmul.f32 %v13, %v13
    %v30 = vmul.f32 %v14, %v14
    %v31 = vmul.f32 %v15, %v15
    %v32 = vmul.f32 %v16, %v16
    %v33 = vmul.f32 %v17, %v17
    %v34 = vmul.f32 %v18, %v18
    %v35 = vmul.f32 %v19, %v19
    %v36 = vmul.f32 %v20, %v20
    %v37 = vmul.f32 %v21, %v21
    %v38 = vmul.f32 %v22, %v22
    %v39 = vmul.f32 %v23, %v23
    %v40 = vmul.f32 %v24, %v24
    %vm41 = vcmask 261120
    %v43 = vsel %vm41, 1.0, 0
    %v46 = vsel %vm41, %v25, 0
    %v49 = vsel %vm41, %v26, 0
    %v52 = vsel %vm41, %v27, 0
    %v55 = vsel %vm41, %v28, 0
    %v58 = vsel %vm41, %v29, 0
    %v61 = vsel %vm41, %v30, 0
    %v64 = vsel %vm41, %v31, 0
    %v67 = vsel %vm41, %v32, 0
    %v70 = vsel %vm41, %v33, 0
    %v73 = vsel %vm41, %v34, 0
    %v76 = vsel %vm41, %v35, 0
    %v79 = vsel %vm41, %v36, 0
    %v82 = vsel %vm41, %v37, 0
    %v85 = vsel %vm41, %v38, 0
    %v88 = vsel %vm41, %v39, 0
    %v91 = vsel %vm41, %v40, 0
    %93 = vmatprep.subr.mxu0 0.0
    %94 = vmatpush1.xpose.msra.mxu0 %v46
    %95 = vmatprep.subr.mxu0 0.0
    %96 = vmatpush1.xpose.msra.mxu0 %v49
    %97 = vmatprep.subr.mxu0 0.0
    %98 = vmatpush1.xpose.msra.mxu0 %v52
    %99 = vmatprep.subr.mxu0 0.0
    %100 = vmatpush1.xpose.msra.mxu0 %v55
    %101 = vmatprep.subr.mxu0 0.0
    %102 = vmatpush1.xpose.msra.mxu0 %v58
    %103 = vmatprep.subr.mxu0 0.0
    %104 = vmatpush1.xpose.msra.mxu0 %v61
    %105 = vmatprep.subr.mxu0 0.0
    %106 = vmatpush1.xpose.msra.mxu0 %v64
    %107 = vmatprep.subr.mxu0 0.0
    %108 = vmatpush1.xpose.msra.mxu0 %v67
    %109 = vmatprep.subr.mxu0 0.0
    %110 = vmatpush1.xpose.msra.mxu0 %v70
    %111 = vmatprep.subr.mxu0 0.0
    %112 = vmatpush1.xpose.msra.mxu0 %v73
    %113 = vmatprep.subr.mxu0 0.0
    %114 = vmatpush1.xpose.msra.mxu0 %v76
    %115 = vmatprep.subr.mxu0 0.0
    %116 = vmatpush1.xpose.msra.mxu0 %v79
    %117 = vmatprep.subr.mxu0 0.0
    %118 = vmatpush1.xpose.msra.mxu0 %v82
    %119 = vmatprep.subr.mxu0 0.0
    %120 = vmatpush1.xpose.msra.mxu0 %v85
    %121 = vmatprep.subr.mxu0 0.0
    %122 = vmatpush1.xpose.msra.mxu0 %v88
    %123 = vmatprep.subr.mxu0 0.0
    %124 = vmatpush1.xpose.msra.mxu0 %v91
    %125 = vmatprep.subr.mxu0 0.0
    %126 = vmatpush1.xpose.msra.mxu0 0.0
    %127 = vmatprep.subr.mxu0 0.0
    %128 = vmatpush1.xpose.msra.mxu0 0.0
    %129 = vmatprep.subr.mxu0 0.0
    %130 = vmatpush1.xpose.msra.mxu0 0.0
    %131 = vmatprep.subr.mxu0 0.0
    %132 = vmatpush1.xpose.msra.mxu0 0.0
    %133 = vmatprep.subr.mxu0 0.0
    %134 = vmatpush1.xpose.msra.mxu0 0.0
    %135 = vmatprep.subr.mxu0 0.0
    %136 = vmatpush1.xpose.msra.mxu0 0.0
    %137 = vmatprep.subr.mxu0 0.0
    %138 = vmatpush1.xpose.msra.mxu0 0.0
    %139 = vmatprep.subr.mxu0 0.0
    %140 = vmatpush1.xpose.msra.mxu0 0.0
    %141 = vmatprep.subr.mxu0 0.0
    %142 = vmatpush1.xpose.msra.mxu0 0.0
    %143 = vmatprep.subr.mxu0 0.0
    %144 = vmatpush1.xpose.msra.mxu0 0.0
    %145 = vmatprep.subr.mxu0 0.0
    %146 = vmatpush1.xpose.msra.mxu0 0.0
    %147 = vmatprep.subr.mxu0 0.0
    %148 = vmatpush1.xpose.msra.mxu0 0.0
    %149 = vmatprep.subr.mxu0 0.0
    %150 = vmatpush1.xpose.msra.mxu0 0.0
    %151 = vmatprep.subr.mxu0 0.0
    %152 = vmatpush1.xpose.msra.mxu0 0.0
    %153 = vmatprep.subr.mxu0 0.0
    %154 = vmatpush1.xpose.msra.mxu0 0.0
    %155 = vmatprep.subr.mxu0 0.0
    %156 = vmatpush1.xpose.msra.mxu0 0.0
    %157 = vmatprep.mubr.f32.mxu0 0.0
    %158 = vmatmul.mubr.f32.gmra.mrb[0].mxu0 %v43
    %v159 = vpop.f32.mrb[0].mxu0
    %v160 = vadd.f32 0.0, %v159
    %v161 = vpop.f32.mrb[0].mxu0
    %162 = vdwg.mxu0
    %vm163 = vcmp.ge.f32.partialorder %v160, 1.0
    %v164 = vsel %vm163, 1, 0
    %165 = vst [vmem:[#allocation2] sm:$0x1] %v164
    // Predicated region
    $region6: #{tpu_custom_call.1} parent=1 // pred_check
      _
    $region7: #{tpu_custom_call.1} parent=1 // pred_check_branch
      %167 = sbr.rel (0) target = $region9
    $region8: #{tpu_custom_call.1} parent=1 // pred_region
      %s169 = ssub.s32 16, 16
      %170 = vsyncadd [#allocation3], %s169
      %s172 = sshll.u32 [#allocation2], 4
      %s173 = int_to_ptr.vmem [resolvable:$true] %s172
      %175 = dma.vmem_to_hbm [thread:$0]  %s173, 16, %s1, [#allocation3]
    $region9: #{tpu_custom_call.1} parent=1 // pred_fallthru
      _
    // Predicated region
    $region10: #{tpu_custom_call.1} parent=1 // pred_check
      _
    $region11: #{tpu_custom_call.1} parent=1 // pred_check_branch
      %177 = sbr.rel (0) target = $region13
    $region12: #{tpu_custom_call.1} parent=1 // pred_region
      %178 = dma.done [#allocation3], 16
    $region13: #{tpu_custom_call.1} parent=1 // pred_fallthru
      _
    %179 = vsyncpa [#allocation3], 1

</llo_original>
